<compile_context>
chip_gen: v7x
topology: tpu7x:2x2x1
jax: 0.10.0
libtpu: 0.0.40
codegen_flags: <defaults>
</compile_context>

<pallas_src>
import functools

import jax
import jax.numpy as jnp
import numpy as np
from jax.experimental import pallas as pl
from jax.experimental.pallas import tpu as pltpu


# Sublane row of the per-tile [8, 128] partial-sum slab used for each quantity.
_ROW_COS, _ROW_ABS, _ROW_SQ, _ROW_CE = 0, 1, 2, 3


# ----------------------------------------------------------------------------
# Kernel body: one batch tile -> one [8,128] slab of partial sums.
# ----------------------------------------------------------------------------
def _tile_body(pred_ref, tgt_ref, logits_ref, labels_ref, out_ref, *,
               batch, eps, needs_mask, has_cls):
    i = pl.program_id(0)

    p = pred_ref[...].astype(jnp.float32)
    t = tgt_ref[...].astype(jnp.float32)
    tb = p.shape[0]

    # Feature-axis reductions shared by cosine and (via identity) MSE.
    dot = jnp.sum(p * t, axis=1, keepdims=True)              # [TB, 1]
    p2 = jnp.sum(p * p, axis=1, keepdims=True)               # [TB, 1]
    t2 = jnp.sum(t * t, axis=1, keepdims=True)               # [TB, 1]

    # Per-row cosine similarity (nn.CosineSimilarity(dim=1, eps)):
    #   dot / max(||p||*||t||, eps) == dot * rsqrt(max(p2*t2, eps^2))
    cos_row = dot * jax.lax.rsqrt(jnp.maximum(p2 * t2, eps * eps))
    abs_row = jnp.sum(jnp.abs(p - t), axis=1, keepdims=True)  # [TB, 1]
    # Squared-error row sum via the algebraic identity (reuses dot/p2/t2).
    sq_row = p2 + t2 - 2.0 * dot                              # [TB, 1]

    if has_cls:
        # Cross-entropy with integer class labels (nn.CrossEntropyLoss), summed
        # per row; the mean (1/B) is applied in the JAX finalize step.
        logits = logits_ref[...].astype(jnp.float32)           # [TB, C]
        labels = labels_ref[...]                                # [TB, 1] int32
        m = jnp.max(logits, axis=1, keepdims=True)
        lse = jnp.log(jnp.sum(jnp.exp(logits - m), axis=1, keepdims=True)) + m
        col = jax.lax.broadcasted_iota(jnp.int32, logits.shape, 1)
        picked = jnp.sum(jnp.where(col == labels, logits, 0.0),
                         axis=1, keepdims=True)
        ce_row = lse - picked                                   # [TB, 1]
    else:
        ce_row = None

    # Row-granularity masking of the padded remainder tile (only emitted when
    # B % TB != 0).  Selecting AFTER the reductions is fine: select does not
    # propagate garbage from the unselected branch.
    if needs_mask:
        row = jax.lax.broadcasted_iota(jnp.int32, (tb, 1), 0) + i * tb
        valid = row < batch
        cos_row = jnp.where(valid, cos_row, 0.0)
        abs_row = jnp.where(valid, abs_row, 0.0)
        sq_row = jnp.where(valid, sq_row, 0.0)
        if ce_row is not None:
            ce_row = jnp.where(valid, ce_row, 0.0)

    # Collapse the [TB,1] row vectors to per-tile scalars.
    # TODO(synk): could defer this collapse further (accumulate row vectors in a
    # persistent VMEM scratch and reduce once) to shave a few XLU pushes per
    # step on compute-leaning configs (v7x / bf16); negligible when HBM-bound.
    cos_s = jnp.sum(cos_row)
    abs_s = jnp.sum(abs_row)
    sq_s = jnp.sum(sq_row)
    ce_s = jnp.sum(ce_row) if ce_row is not None else None

    # Lane-dense [8,128] slab: row r broadcasts quantity r across all lanes.
    sub = jax.lax.broadcasted_iota(jnp.int32, (8, 128), 0)
    slab = jnp.where(sub == _ROW_COS, cos_s, 0.0)
    slab = jnp.where(sub == _ROW_ABS, abs_s, slab)
    slab = jnp.where(sub == _ROW_SQ, sq_s, slab)
    if ce_s is not None:
        slab = jnp.where(sub == _ROW_CE, ce_s, slab)
    out_ref[0] = slab


def _kernel_with_cls(pred_ref, tgt_ref, logits_ref, labels_ref, out_ref, **st):
    _tile_body(pred_ref, tgt_ref, logits_ref, labels_ref, out_ref,
               has_cls=True, **st)


def _kernel_no_cls(pred_ref, tgt_ref, out_ref, **st):
    _tile_body(pred_ref, tgt_ref, None, None, out_ref, has_cls=False, **st)


# ----------------------------------------------------------------------------
# Batch-tile sizing.
#   * Accounts for each operand's ACTUAL itemsize, double buffering, and the
#     f32 upcast temporaries Mosaic materializes in-kernel.
#   * Never collapses to one grid step when the stream is non-trivial
#     (grid=(1,) has zero DMA/compute overlap).
#   * Rounds to the dtype-native sublane multiple (8 f32 / 16 bf16 / 32 int8).
# ----------------------------------------------------------------------------
def _choose_batch_tile(B, D, C, pred_isz, tgt_isz, logits_isz,
                       budget_bytes=24 << 20):
    in_row = pred_isz * D + tgt_isz * D + logits_isz * C + (4 if C else 0)
    per_row = 2 * in_row + 16 * D + 8 * C + 16   # 2x pipeline bufs + f32 temps
    tb = max(1, budget_bytes // per_row)
    if B * in_row > (1 << 20):                   # stream > ~1 MiB: keep >=4 steps
        tb = min(tb, -(-B // 4))
        tb = max(tb, 128)
    tb = min(tb, B)
    if tb >= B:
        return B
    min_isz = min(pred_isz, tgt_isz)
    sub = 8 if min_isz >= 4 else (16 if min_isz == 2 else 32)
    tb = max(sub, (tb // sub) * sub)
    return int(min(tb, B))


# ----------------------------------------------------------------------------
# CMAMLoss forward (default configuration: cosine/mae/mse/rec weights = 1,
# cls_weight = 0.005, cls_loss_type = 'ce', all other weights 0).
# ----------------------------------------------------------------------------
def make_cmam_loss(*, cosine_weight=1.0, mae_weight=1.0, mse_weight=1.0,
                   rec_weight=1.0, cls_weight=0.005, epsilon=1e-8,
                   cls_loss_type="ce"):
    if cls_loss_type.lower() != "ce":
        # TODO(synk): 'bce' / 'mse' classification-loss variants not implemented.
        raise NotImplementedError("Only cls_loss_type='ce' is implemented.")

    # TODO(synk): mmd_weight / moment_weight / cyclic_weight / mi_weight branches
    # (all 0.0 in the default CMAMLoss config) are not implemented.

    @jax.jit
    def forward(predictions, targets, cls_logits=None, cls_labels=None):
        B, D = predictions.shape
        has_cls = (cls_weight > 0 and cls_logits is not None
                   and cls_labels is not None)
        C = int(cls_logits.shape[1]) if has_cls else 0

        pred_isz = jnp.dtype(predictions.dtype).itemsize
        tgt_isz = jnp.dtype(targets.dtype).itemsize
        logits_isz = jnp.dtype(cls_logits.dtype).itemsize if has_cls else 0

        TB = _choose_batch_tile(B, D, C, pred_isz, tgt_isz, logits_isz)
        num_tiles = int(pl.cdiv(B, TB))
        needs_mask = (B % TB) != 0

        static = dict(batch=B, eps=float(epsilon), needs_mask=needs_mask)

        in_specs = [
            pl.BlockSpec((TB, D), lambda i: (i, 0)),
            pl.BlockSpec((TB, D), lambda i: (i, 0)),
        ]
        operands = [predictions, targets]
        if has_cls:
            labels_2d = cls_labels.reshape(B, 1).astype(jnp.int32)
            in_specs += [
                pl.BlockSpec((TB, C), lambda i: (i, 0)),
                pl.BlockSpec((TB, 1), lambda i: (i, 0)),
            ]
            operands += [cls_logits, labels_2d]
            kernel = functools.partial(_kernel_with_cls, **static)
        else:
            kernel = functools.partial(_kernel_no_cls, **static)

        partials = pl.pallas_call(
            kernel,
            out_shape=jax.ShapeDtypeStruct((num_tiles, 8, 128), jnp.float32),
            grid_spec=pltpu.PrefetchScalarGridSpec(
                num_scalar_prefetch=0,
                grid=(num_tiles,),
                in_specs=in_specs,
                out_specs=pl.BlockSpec((1, 8, 128), lambda i: (i, 0, 0)),
            ),
            compiler_params=pltpu.CompilerParams(
                dimension_semantics=("parallel",),
                vmem_limit_bytes=48 << 20),
        )(*operands)

        # Tiny num_tiles-length reduction + weighting in plain JAX (same jit).
        sums = jnp.sum(partials[:, :, 0], axis=0)          # [8]
        cosine_sim = sums[_ROW_COS] / B
        mae = sums[_ROW_ABS] / (B * D)
        mse = sums[_ROW_SQ] / (B * D)
        cosine_loss = 1.0 - cosine_sim
        total = (cosine_weight * cosine_loss
                 + mae_weight * mae
                 + mse_weight * mse) * rec_weight

        loss_dict = {"cosine_sim": cosine_sim, "mae": mae, "mse": mse}
        if has_cls:
            cls_loss = sums[_ROW_CE] / B
            total = total + cls_weight * cls_loss
            loss_dict["cls_loss"] = cls_loss
        loss_dict["total_loss"] = total
        return loss_dict

    return forward


# ----------------------------------------------------------------------------
# Pure-JAX reference for validation.
# ----------------------------------------------------------------------------
def _reference(predictions, targets, cls_logits, cls_labels, *,
               cls_weight=0.005, eps=1e-8):
    dot = jnp.sum(predictions * targets, axis=1)
    pn = jnp.linalg.norm(predictions, axis=1)
    tn = jnp.linalg.norm(targets, axis=1)
    cos = jnp.mean(dot / jnp.maximum(pn * tn, eps))
    mae = jnp.mean(jnp.abs(predictions - targets))
    mse = jnp.mean((predictions - targets) ** 2)
    lse = jax.nn.logsumexp(cls_logits, axis=1)
    picked = jnp.take_along_axis(cls_logits, cls_labels[:, None], axis=1)[:, 0]
    ce = jnp.mean(lse - picked)
    total = (1.0 - cos) + mae + mse + cls_weight * ce
    return {"cosine_sim": cos, "mae": mae, "mse": mse,
            "cls_loss": ce, "total_loss": total}


def _run_case(cmam_loss, key, B, D, C, rtol, atol):
    k1, k2, k3, k4 = jax.random.split(key, 4)
    predictions = jax.random.normal(k1, (B, D), dtype=jnp.float32)
    targets = jax.random.normal(k2, (B, D), dtype=jnp.float32)
    cls_logits = jax.random.normal(k3, (B, C), dtype=jnp.float32)
    cls_labels = jax.random.randint(k4, (B,), 0, C, dtype=jnp.int32)

    out = cmam_loss(predictions, targets, cls_logits, cls_labels)
    out = jax.tree_util.tree_map(jax.block_until_ready, out)

    ref = _reference(predictions, targets, cls_logits, cls_labels)
    for name in ("cosine_sim", "mae", "mse", "cls_loss", "total_loss"):
        np.testing.assert_allclose(
            np.asarray(out[name]), np.asarray(ref[name]), rtol=rtol, atol=atol
        )


if __name__ == "__main__":
    cmam_loss = make_cmam_loss()  # default CMAMLoss configuration
    key = jax.random.PRNGKey(0)
    k_small, k_big = jax.random.split(key)

    # Small single-tile case (matches the module's typical [B, D] usage).
    _run_case(cmam_loss, k_small, B=8, D=32, C=4, rtol=1e-5, atol=1e-5)

    # Multi-tile case exercising the parallel grid + remainder-row masking
    # (530 % 128 != 0), still small.
    _run_case(cmam_loss, k_big, B=530, D=256, C=5, rtol=1e-4, atol=1e-5)

    print("KERNEL_OK")
</pallas_src>

<mosaic_0001>
module attributes {stable_mosaic.version = 11 : i64} {
  func.func @_kernel_with_cls(%arg0: i32, %arg1: memref<8x32xf32, #tpu.memory_space<vmem>>, %arg2: memref<8x32xf32, #tpu.memory_space<vmem>>, %arg3: memref<8x4xf32, #tpu.memory_space<vmem>>, %arg4: memref<8x1xi32, #tpu.memory_space<vmem>>, %arg5: memref<1x8x128xf32, #tpu.memory_space<vmem>>) attributes {dimension_semantics = [#tpu.dimension_semantics<parallel>], iteration_bounds = array<i64: 1>, scalar_prefetch = 0 : i64, scratch_operands = 0 : i64, tpu.core_type = #tpu.core_type<tc>, window_params = [{transform_indices = @transform_0, window_bounds = array<i64: 8, 32>}, {transform_indices = @transform_1, window_bounds = array<i64: 8, 32>}, {transform_indices = @transform_2, window_bounds = array<i64: 8, 4>}, {transform_indices = @transform_3, window_bounds = array<i64: 8, 1>}, {transform_indices = @transform_4, window_bounds = array<i64: 1, 8, 128>}]} {
    %c0 = arith.constant 0 : index
    %c0_0 = arith.constant 0 : index
    %0 = vector.load %arg1[%c0, %c0_0] : memref<8x32xf32, #tpu.memory_space<vmem>>, vector<8x32xf32>
    %c0_1 = arith.constant 0 : index
    %c0_2 = arith.constant 0 : index
    %1 = vector.load %arg2[%c0_1, %c0_2] : memref<8x32xf32, #tpu.memory_space<vmem>>, vector<8x32xf32>
    %2 = arith.mulf %0, %1 : vector<8x32xf32>
    %cst = arith.constant dense<0.000000e+00> : vector<8xf32>
    %3 = vector.multi_reduction <add>, %2, %cst [1] : vector<8x32xf32> to vector<8xf32>
    %4 = vector.shape_cast %3 : vector<8xf32> to vector<8x1xf32>
    %5 = arith.mulf %0, %0 : vector<8x32xf32>
    %cst_3 = arith.constant dense<0.000000e+00> : vector<8xf32>
    %6 = vector.multi_reduction <add>, %5, %cst_3 [1] : vector<8x32xf32> to vector<8xf32>
    %7 = vector.shape_cast %6 : vector<8xf32> to vector<8x1xf32>
    %8 = arith.mulf %1, %1 : vector<8x32xf32>
    %cst_4 = arith.constant dense<0.000000e+00> : vector<8xf32>
    %9 = vector.multi_reduction <add>, %8, %cst_4 [1] : vector<8x32xf32> to vector<8xf32>
    %10 = vector.shape_cast %9 : vector<8xf32> to vector<8x1xf32>
    %11 = arith.mulf %7, %10 : vector<8x1xf32>
    %cst_5 = arith.constant 1.000000e-16 : f32
    %12 = vector.broadcast %cst_5 : f32 to vector<8x1xf32>
    %13 = arith.maximumf %11, %12 : vector<8x1xf32>
    %14 = math.rsqrt %13 : vector<8x1xf32>
    %15 = arith.mulf %4, %14 : vector<8x1xf32>
    %16 = arith.subf %0, %1 : vector<8x32xf32>
    %17 = math.absf %16 : vector<8x32xf32>
    %cst_6 = arith.constant dense<0.000000e+00> : vector<8xf32>
    %18 = vector.multi_reduction <add>, %17, %cst_6 [1] : vector<8x32xf32> to vector<8xf32>
    %19 = vector.shape_cast %18 : vector<8xf32> to vector<8x1xf32>
    %20 = arith.addf %7, %10 : vector<8x1xf32>
    %cst_7 = arith.constant 2.000000e+00 : f32
    %21 = vector.broadcast %cst_7 : f32 to vector<8x1xf32>
    %22 = arith.mulf %21, %4 : vector<8x1xf32>
    %23 = arith.subf %20, %22 : vector<8x1xf32>
    %c0_8 = arith.constant 0 : index
    %c0_9 = arith.constant 0 : index
    %24 = vector.load %arg3[%c0_8, %c0_9] : memref<8x4xf32, #tpu.memory_space<vmem>>, vector<8x4xf32>
    %c0_10 = arith.constant 0 : index
    %c0_11 = arith.constant 0 : index
    %25 = vector.load %arg4[%c0_10, %c0_11] : memref<8x1xi32, #tpu.memory_space<vmem>>, vector<8x1xi32>
    %cst_12 = arith.constant dense<0xFF800000> : vector<8xf32>
    %26 = vector.multi_reduction <maximumf>, %24, %cst_12 [1] : vector<8x4xf32> to vector<8xf32>
    %27 = vector.shape_cast %26 : vector<8xf32> to vector<8x1xf32>
    %28 = vector.broadcast %27 : vector<8x1xf32> to vector<8x4xf32>
    %29 = arith.subf %24, %28 : vector<8x4xf32>
    %30 = math.exp %29 : vector<8x4xf32>
    %cst_13 = arith.constant dense<0.000000e+00> : vector<8xf32>
    %31 = vector.multi_reduction <add>, %30, %cst_13 [1] : vector<8x4xf32> to vector<8xf32>
    %32 = vector.shape_cast %31 : vector<8xf32> to vector<8x1xf32>
    %33 = math.log %32 : vector<8x1xf32>
    %34 = arith.addf %33, %27 : vector<8x1xf32>
    %35 = tpu.iota {dimensions = array<i32: 1>} : vector<8x4xi32>
    %36 = vector.broadcast %25 : vector<8x1xi32> to vector<8x4xi32>
    %37 = arith.cmpi eq, %35, %36 : vector<8x4xi32>
    %cst_14 = arith.constant 0.000000e+00 : f32
    %38 = vector.broadcast %cst_14 : f32 to vector<8x4xf32>
    %39 = arith.select %37, %24, %38 : vector<8x4xi1>, vector<8x4xf32>
    %cst_15 = arith.constant dense<0.000000e+00> : vector<8xf32>
    %40 = vector.multi_reduction <add>, %39, %cst_15 [1] : vector<8x4xf32> to vector<8xf32>
    %41 = vector.shape_cast %40 : vector<8xf32> to vector<8x1xf32>
    %42 = arith.subf %34, %41 : vector<8x1xf32>
    %43 = vector.shape_cast %15 : vector<8x1xf32> to vector<1x8x1xf32>
    %cst_16 = arith.constant dense<0.000000e+00> : vector<1xf32>
    %44 = vector.multi_reduction <add>, %43, %cst_16 [1, 2] : vector<1x8x1xf32> to vector<1xf32>
    %45 = vector.shape_cast %44 : vector<1xf32> to vector<1x1x1xf32>
    %46 = vector.extract %45[0, 0, 0] : f32 from vector<1x1x1xf32>
    %47 = vector.shape_cast %19 : vector<8x1xf32> to vector<1x8x1xf32>
    %cst_17 = arith.constant dense<0.000000e+00> : vector<1xf32>
    %48 = vector.multi_reduction <add>, %47, %cst_17 [1, 2] : vector<1x8x1xf32> to vector<1xf32>
    %49 = vector.shape_cast %48 : vector<1xf32> to vector<1x1x1xf32>
    %50 = vector.extract %49[0, 0, 0] : f32 from vector<1x1x1xf32>
    %51 = vector.shape_cast %23 : vector<8x1xf32> to vector<1x8x1xf32>
    %cst_18 = arith.constant dense<0.000000e+00> : vector<1xf32>
    %52 = vector.multi_reduction <add>, %51, %cst_18 [1, 2] : vector<1x8x1xf32> to vector<1xf32>
    %53 = vector.shape_cast %52 : vector<1xf32> to vector<1x1x1xf32>
    %54 = vector.extract %53[0, 0, 0] : f32 from vector<1x1x1xf32>
    %55 = vector.shape_cast %42 : vector<8x1xf32> to vector<1x8x1xf32>
    %cst_19 = arith.constant dense<0.000000e+00> : vector<1xf32>
    %56 = vector.multi_reduction <add>, %55, %cst_19 [1, 2] : vector<1x8x1xf32> to vector<1xf32>
    %57 = vector.shape_cast %56 : vector<1xf32> to vector<1x1x1xf32>
    %58 = vector.extract %57[0, 0, 0] : f32 from vector<1x1x1xf32>
    %59 = tpu.iota {dimensions = array<i32: 0>} : vector<8x128xi32>
    %c0_i32 = arith.constant 0 : i32
    %60 = vector.broadcast %c0_i32 : i32 to vector<8x128xi32>
    %61 = arith.cmpi eq, %59, %60 : vector<8x128xi32>
    %cst_20 = arith.constant 0.000000e+00 : f32
    %62 = vector.broadcast %46 : f32 to vector<8x128xf32>
    %63 = vector.broadcast %cst_20 : f32 to vector<8x128xf32>
    %64 = arith.select %61, %62, %63 : vector<8x128xi1>, vector<8x128xf32>
    %c1_i32 = arith.constant 1 : i32
    %65 = vector.broadcast %c1_i32 : i32 to vector<8x128xi32>
    %66 = arith.cmpi eq, %59, %65 : vector<8x128xi32>
    %67 = vector.broadcast %50 : f32 to vector<8x128xf32>
    %68 = arith.select %66, %67, %64 : vector<8x128xi1>, vector<8x128xf32>
    %c2_i32 = arith.constant 2 : i32
    %69 = vector.broadcast %c2_i32 : i32 to vector<8x128xi32>
    %70 = arith.cmpi eq, %59, %69 : vector<8x128xi32>
    %71 = vector.broadcast %54 : f32 to vector<8x128xf32>
    %72 = arith.select %70, %71, %68 : vector<8x128xi1>, vector<8x128xf32>
    %c3_i32 = arith.constant 3 : i32
    %73 = vector.broadcast %c3_i32 : i32 to vector<8x128xi32>
    %74 = arith.cmpi eq, %59, %73 : vector<8x128xi32>
    %75 = vector.broadcast %58 : f32 to vector<8x128xf32>
    %76 = arith.select %74, %75, %72 : vector<8x128xi1>, vector<8x128xf32>
    %c0_21 = arith.constant 0 : index
    %c0_22 = arith.constant 0 : index
    %c0_23 = arith.constant 0 : index
    %77 = vector.load %arg5[%c0_21, %c0_22, %c0_23] : memref<1x8x128xf32, #tpu.memory_space<vmem>>, vector<1x8x128xf32>
    %78 = vector.shape_cast %77 : vector<1x8x128xf32> to vector<8x128xf32>
    %79 = vector.shape_cast %76 : vector<8x128xf32> to vector<1x8x128xf32>
    tpu.vector_store %arg5[%c0_21, %c0_22, %c0_23], %79 {strides = array<i32>} : memref<1x8x128xf32, #tpu.memory_space<vmem>>, vector<1x8x128xf32>,
    return
  }
  func.func @transform_0(%arg0: i32) -> (i32, i32) {
    %c0_i32 = arith.constant 0 : i32
    %c0_i32_0 = arith.constant 0 : i32
    return %arg0, %c0_i32 : i32, i32
  }
  func.func @transform_1(%arg0: i32) -> (i32, i32) {
    %c0_i32 = arith.constant 0 : i32
    %c0_i32_0 = arith.constant 0 : i32
    return %arg0, %c0_i32 : i32, i32
  }
  func.func @transform_2(%arg0: i32) -> (i32, i32) {
    %c0_i32 = arith.constant 0 : i32
    %c0_i32_0 = arith.constant 0 : i32
    return %arg0, %c0_i32 : i32, i32
  }
  func.func @transform_3(%arg0: i32) -> (i32, i32) {
    %c0_i32 = arith.constant 0 : i32
    %c0_i32_0 = arith.constant 0 : i32
    return %arg0, %c0_i32 : i32, i32
  }
  func.func @transform_4(%arg0: i32) -> (i32, i32, i32) {
    %c0_i32 = arith.constant 0 : i32
    %c0_i32_0 = arith.constant 0 : i32
    %c0_i32_1 = arith.constant 0 : i32
    return %arg0, %c0_i32, %c0_i32_0 : i32, i32, i32
  }
}

</mosaic_0001>

<llo_original>
// kernel: forward.1
$region0: #{forward.1}
  #allocation0 [shape = 'u32[]', space=smem, size = 0x4, offset = 0x4, fixed_abs, tag = 'smem constant byte address 0x4 - core index']
  #allocation1 [shape = 'u32[144,128]{1,0:T(1,128)}', space=vmem, size = 0x12000, scoped, tag = 'internal scratch']
  %s0 = inlined_call_operand.vmem [shape: f32[8,32], index: 0, kind: input, shape index: {}]
  %s1 = inlined_call_operand.vmem [shape: f32[8,32], index: 1, kind: input, shape index: {}]
  %s2 = inlined_call_operand.vmem [shape: f32[8,4], index: 2, kind: input, shape index: {}]
  %s3 = inlined_call_operand.vmem [shape: s32[8,1], index: 3, kind: input, shape index: {}]
  %s4 = inlined_call_operand.vmem [shape: f32[1,8,128], index: 4, kind: output, shape index: {}]
  %s5 = sld [smem:[#allocation0]]
  $region26: #{forward.1} parent=0
    _
  %s7 = ssub.s32 1, %s5
  %s8 = scalar_select 0, %s7, %s5
  // Predicated region
  $region2: #{forward.1} parent=0 // pred_check
    _
  $region3: #{forward.1} parent=0 // pred_check_branch
    %10 = sbr.rel (0) target = $region5
  $region4: #{forward.1} parent=0 // pred_region
    _
  $region5: #{forward.1} parent=0 // pred_fallthru
    _
  // Predicated region
  $region6: #{forward.1} parent=0 // pred_check
    _
  $region7: #{forward.1} parent=0 // pred_check_branch
    %12 = sbr.rel (0) target = $region9
  $region8: #{forward.1} parent=0 // pred_region
    _
  $region9: #{forward.1} parent=0 // pred_fallthru
    _
  // Predicated region
  $region10: #{forward.1} parent=0 // pred_check
    _
  $region11: #{forward.1} parent=0 // pred_check_branch
    %14 = sbr.rel (0) target = $region13
  $region12: #{forward.1} parent=0 // pred_region
    _
  $region13: #{forward.1} parent=0 // pred_fallthru
    _
  // Predicated region
  $region14: #{forward.1} parent=0 // pred_check
    _
  $region15: #{forward.1} parent=0 // pred_check_branch
    %16 = sbr.rel (0) target = $region17
  $region16: #{forward.1} parent=0 // pred_region
    _
  $region17: #{forward.1} parent=0 // pred_fallthru
    _
  %v17 = vld [vmem:[%s0] sm:$0xff]
  %v18 = vld [vmem:[%s1] sm:$0xff]
  %v19 = vmul.f32 %v17, %v18
  %vm20 = vcmask 261120
  %v21 = vsel %vm20, %v19, 0.0
  %22 = vadd.xlane.f32.xlu0 %v21
  %v23 = vpop.xlane.xlu0 %22
  %v24 = vmul.f32 %v17, %v17
  %v25 = vsel %vm20, %v24, 0.0
  %26 = vadd.xlane.f32.xlu0 %v25
  %v27 = vpop.xlane.xlu0 %26
  %v28 = vmul.f32 %v18, %v18
  %v29 = vsel %vm20, %v28, 0.0
  %30 = vadd.xlane.f32.xlu0 %v29
  %v31 = vpop.xlane.xlu0 %30
  %v32 = vmul.f32 %v27, %v31
  %v33 = vmax.f32 %v32, 1e-16
  %v34 = vrsqrt.pop %v33
  %v35 = vmul.f32 %v23, %v34
  %v36 = vsub.f32 %v17, %v18
  %v37 = vand.u32 2147483647, %v36
  %v38 = vsel %vm20, %v37, 0.0
  %39 = vadd.xlane.f32.xlu0 %v38
  %v40 = vpop.xlane.xlu0 %39
  %v41 = vadd.f32 %v27, %v31
  %v42 = vmul.f32 %v23, 2.0
  %v43 = vsub.f32 %v41, %v42
  %v44 = vld [vmem:[%s2] sm:$0xff]
  %v45 = vld [vmem:[%s3] sm:$0xff]
  %vm46 = vcmask 31744
  %v47 = vsel %vm46, %v44, -inf
  %48 = vmax.xlane.f32.xlu0 %v47
  %v49 = vpop.xlane.xlu0 %48
  %v50 = vsub.f32 %v44, %v49
  %v51 = vmul.f32 %v50, 1.442695
  %v52 = vpow.pop %v51
  %v53 = vsel %vm46, %v52, 0.0
  %54 = vadd.xlane.f32.xlu0 %v53
  %v55 = vpop.xlane.xlu0 %54
  %v56 = vlog2.pop %v55
  %v57 = vmul.f32 %v56, 0.6931472
  %v58 = vadd.f32 %v57, %v49
  %v59 = vlaneseq
  %v60 = vand.u32 %v59, 127
  %61 = vset.pattern.permute.xlu0 0
  %62 = vperm.xlu0 %61, %v45
  %v63 = vpop.permute.xlu0 %62
  %vm64 = vcmp.eq.s32.totalorder %v60, %v63
  %v65 = vsel %vm64, %v44, 0.0
  %v66 = vsel %vm46, %v65, 0.0
  %67 = vadd.xlane.f32.xlu0 %v66
  %v68 = vpop.xlane.xlu0 %67
  %v69 = vsub.f32 %v58, %v68
  %vm70 = vcmask 7168
  %v71 = vsel %vm70, %v35, 0.0
  %72 = vadd.xlane.f32.xlu0 %v71
  %v73 = vpop.xlane.xlu0 %72
  %v74 = vrot.slane %v73, 4
  %v75 = vadd.f32 %v73, %v74
  %v76 = vrot.slane %v75, 2
  %v77 = vadd.f32 %v75, %v76
  %v78 = vrot.slane %v77, 1
  %v79 = vadd.f32 %v77, %v78
  %s80 = vtos %v79
  %v81 = vsel %vm70, %v40, 0.0
  %82 = vadd.xlane.f32.xlu0 %v81
  %v83 = vpop.xlane.xlu0 %82
  %v84 = vrot.slane %v83, 4
  %v85 = vadd.f32 %v83, %v84
  %v86 = vrot.slane %v85, 2
  %v87 = vadd.f32 %v85, %v86
  %v88 = vrot.slane %v87, 1
  %v89 = vadd.f32 %v87, %v88
  %s90 = vtos %v89
  %v91 = vsel %vm70, %v43, 0.0
  %92 = vadd.xlane.f32.xlu0 %v91
  %v93 = vpop.xlane.xlu0 %92
  %v94 = vrot.slane %v93, 4
  %v95 = vadd.f32 %v93, %v94
  %v96 = vrot.slane %v95, 2
  %v97 = vadd.f32 %v95, %v96
  %v98 = vrot.slane %v97, 1
  %v99 = vadd.f32 %v97, %v98
  %s100 = vtos %v99
  %v101 = vsel %vm70, %v69, 0.0
  %102 = vadd.xlane.f32.xlu0 %v101
  %v103 = vpop.xlane.xlu0 %102
  %v104 = vrot.slane %v103, 4
  %v105 = vadd.f32 %v103, %v104
  %v106 = vrot.slane %v105, 2
  %v107 = vadd.f32 %v105, %v106
  %v108 = vrot.slane %v107, 1
  %v109 = vadd.f32 %v107, %v108
  %s110 = vtos %v109
  %v111 = vlaneseq
  %v112 = vshrl.u32 %v111, 7
  %vm113 = vcmp.eq.s32.totalorder %v112, 0
  %v114 = vstv %s80
  %v115 = vsel %vm113, %v114, 0.0
  %vm116 = vcmp.eq.s32.totalorder %v112, 1
  %v117 = vstv %s90
  %v118 = vsel %vm116, %v117, %v115
  %vm119 = vcmp.eq.s32.totalorder %v112, 2
  %v120 = vstv %s100
  %v121 = vsel %vm119, %v120, %v118
  %vm122 = vcmp.eq.s32.totalorder %v112, 3
  %v123 = vstv %s110
  %v124 = vsel %vm122, %v123, %v121
  %125 = vst [vmem:[%s4] sm:$0xff] %v124
  // Predicated region
  $region18: #{forward.1} parent=0 // pred_check
    _
  $region19: #{forward.1} parent=0 // pred_check_branch
    %127 = sbr.rel (0) target = $region21
  $region20: #{forward.1} parent=0 // pred_region
    _
  $region21: #{forward.1} parent=0 // pred_fallthru
    _
  // Predicated region
  $region22: #{forward.1} parent=0 // pred_check
    _
  $region23: #{forward.1} parent=0 // pred_check_branch
    %129 = sbr.rel (0) target = $region25
  $region24: #{forward.1} parent=0 // pred_region
    _
  $region25: #{forward.1} parent=0 // pred_fallthru
    _

</llo_original>
